<compile_context>
chip_gen: v7x
topology: tpu7x:2x2x1
jax: 0.10.0
libtpu: 0.0.40
codegen_flags: <defaults>
</compile_context>

<pallas_src>
from math import sqrt

import numpy as np
import jax
import jax.numpy as jnp
from jax import lax
from jax.experimental import pallas as pl
from jax.experimental.pallas import tpu as pltpu

# ---------------- problem sizes (small, consistent with the module) ----------------
B = 2            # batch
S = 8            # sequence length
E = 32           # embedding_size
A = 8            # attention_size
H = E // A       # number of attention heads (separate AttentionJES modules)
FF = 4 * E       # feed-forward hidden size
BS = B * S       # flattened tokens = 16
SC = H * BS      # concatenated score width = 64
OUT_W = 4 * E    # packed lane-dense output width = 128
W_ROWS = 96      # weight-slab rows
LN_EPS = 1e-5
NEG_BIG = -1e30  # additive mask value (exp underflows to exactly 0)
INV_SCALE = 1.0 / sqrt(E)   # dk = E

# ---------------- masks built ONCE on host (hoisted out of the kernel) ----------------
# Additive score bias (BS, SC): column block h = scores of head h vs all BS (batch-flattened)
# key tokens; disallow cross-batch and future keys.
_r = np.arange(BS)[:, None]
_c = np.arange(SC)[None, :]
_n = _c % BS
_allowed = ((_r // S) == (_n // S)) & ((_r % S) >= (_n % S))
BIAS_MASK = np.where(_allowed, 0.0, NEG_BIG).astype(np.float32)          # (16, 64)

# Head selector (SC, E): row block h keeps only that head's A feature lanes.
_rr = np.arange(SC)[:, None]
_ee = np.arange(E)[None, :]
SEL_MASK = ((_rr // BS) == (_ee // A)).astype(np.float32)                # (64, 32)


def _layernorm(v):
    # PyTorch nn.LayerNorm(E): biased variance over last dim, eps=1e-5, identity affine.
    mu = jnp.mean(v, axis=-1, keepdims=True)
    d = v - mu
    var = jnp.mean(d * d, axis=-1, keepdims=True)
    return d * lax.rsqrt(var + LN_EPS)


# Weight-slab layout (W_ROWS x 128 lanes, packed once at init):
#   [  0:32,   0: 96]  wqkv   (Q columns pre-scaled by 1/sqrt(E))
#   [  0:32,  96:128]  wproj
#   [ 32:96,   0: 32]  sel    (block-diagonal head selector)
#   [ 32:64,  32: 64]  w12 = w1 @ w2      (folded FeedForward)
#   [ 32:48,  64:128]  bias   (causal + cross-batch additive mask)
#   [ 64:65,  32: 64]  b12 = b1 @ w2 + b2
def encoder_kernel(x_ref, w_ref, out_ref):
    xs = x_ref[...]                                   # (16, 64) = [emb | pos]
    x = xs[:, 0:E] + xs[:, E:2 * E]                   # fused positional-encoding add

    wqkv = w_ref[0:32, 0:96]
    wproj = w_ref[0:32, 96:128]
    sel = w_ref[32:96, 0:32]
    w12 = w_ref[32:64, 32:64]
    bias = w_ref[32:48, 64:128]
    b12 = w_ref[64:65, 32:64]

    # Fused QKV projection: one (16,32) @ (32,96) MXU op. Q already scaled by 1/sqrt(E).
    qkv = jnp.dot(x, wqkv, preferred_element_type=jnp.float32)           # (16, 96)
    Q = qkv[:, 0:E]
    K = qkv[:, E:2 * E]
    V = qkv[:, 2 * E:3 * E]

    # Block-diagonal K and V: (SC, E) = H stacked copies, each masked to its head's lanes.
    k_bd = jnp.concatenate([K] * H, axis=0) * sel                        # (64, 32)
    v_bd = jnp.concatenate([V] * H, axis=0) * sel                        # (64, 32)

    # All (batch, head) score matrices in one MXU op: Q @ k_bd^T -> (16, 64).
    scores = lax.dot_general(Q, k_bd, (((1,), (1,)), ((), ())),
                             preferred_element_type=jnp.float32) + bias

    # Per-row max subtraction: exact (constant cancels in each head's softmax), avoids overflow.
    m = jnp.max(scores, axis=-1, keepdims=True)
    p = jnp.exp(scores - m)                                              # (16, 64)

    # Fused numerators + denominators: p @ [v_bd | sel] -> (16, 64).
    pv = jnp.concatenate([v_bd, sel], axis=1)                            # (64, 64)
    ad = jnp.dot(p, pv, preferred_element_type=jnp.float32)              # (16, 64)
    attn_un = ad[:, 0:E]
    denom = ad[:, E:2 * E]

    # EUP approximate reciprocal + one Newton step (keeps full f32 accuracy).
    r = pl.reciprocal(denom, approx=True)
    r = r * (2.0 - denom * r)
    attn = attn_un * r

    # Output projection + attention LayerNorm.
    attn = jnp.dot(attn, wproj, preferred_element_type=jnp.float32)
    mha = _layernorm(x + attn)

    # FeedForward with folded linears: relu(mha @ W12 + b12), then the two LayerNorms.
    ffo = jnp.maximum(jnp.dot(mha, w12, preferred_element_type=jnp.float32) + b12, 0.0)
    ff = _layernorm(mha + ffo)
    enc = _layernorm(mha + ff)

    # Lane-dense packed output: [enc | K | V | zero-pad] -> (16, 128), one unmasked store.
    out_ref[...] = jnp.concatenate(
        [enc, K, V, jnp.zeros((BS, E), jnp.float32)], axis=1)


@jax.jit
def transformer_encoder(embedding, pos_enc, wslab):
    """Returns (encoded (B,S,E), K_all (B,S,H,A), V_all (B,S,H,A))."""
    # Activation slab: [emb | pos] -> (16, 64), one input DMA.
    xslab = jnp.concatenate(
        [embedding.reshape(BS, E), pos_enc.reshape(BS, E)], axis=1)

    vmem = pl.BlockSpec(memory_space=pltpu.MemorySpace.VMEM)
    packed = pl.pallas_call(
        encoder_kernel,
        out_shape=jax.ShapeDtypeStruct((BS, OUT_W), jnp.float32),
        in_specs=[vmem, vmem],
        out_specs=vmem,
    )(xslab, wslab)

    enc = packed[:, 0 * E:1 * E].reshape(B, S, E)
    k_all = packed[:, 1 * E:2 * E].reshape(B, S, H, A)
    v_all = packed[:, 2 * E:3 * E].reshape(B, S, H, A)
    return enc, k_all, v_all


# ---------------- parameter init & one-time packing ----------------
def init_params(key):
    ks = jax.random.split(key, 8)
    # Per-head Linear(E -> A) weights in torch layout (out, in); store transposed & concatenated.
    wq_h = jax.random.normal(ks[0], (H, A, E), jnp.float32) * 0.1
    wk_h = jax.random.normal(ks[1], (H, A, E), jnp.float32) * 0.1
    wv_h = jax.random.normal(ks[2], (H, A, E), jnp.float32) * 0.1
    cat_T = lambda w: jnp.concatenate([w[h].T for h in range(H)], axis=1)    # (E, E)
    wqkv = jnp.concatenate([cat_T(wq_h), cat_T(wk_h), cat_T(wv_h)], axis=1)  # (E, 3E) fused
    wproj = (jax.random.normal(ks[3], (E, E), jnp.float32) * 0.1).T          # Linear(E,E,no bias)^T
    w1 = (jax.random.normal(ks[4], (FF, E), jnp.float32) * 0.1).T            # (E, FF)
    b1 = jax.random.normal(ks[5], (1, FF), jnp.float32) * 0.1
    b2 = jax.random.normal(ks[7], (1, E), jnp.float32) * 0.1
    w2 = (jax.random.normal(ks[6], (E, FF), jnp.float32) * 0.1).T            # (FF, E)
    return (wqkv, wproj, w1, b1, w2, b2)


def pack_weights(params):
    """One-time packing of all weights + masks into a single lane-dense (96,128) slab."""
    wqkv, wproj, w1, b1, w2, b2 = (np.asarray(p, np.float32) for p in params)
    w12 = w1 @ w2                      # fold FF linears (no nonlinearity between them, eval mode)
    b12 = b1 @ w2 + b2
    wqkv_s = wqkv.copy()
    wqkv_s[:, :E] *= INV_SCALE         # fold 1/sqrt(dk) into the Q projection
    slab = np.zeros((W_ROWS, 128), np.float32)
    slab[0:32, 0:96] = wqkv_s
    slab[0:32, 96:128] = wproj
    slab[32:96, 0:32] = SEL_MASK
    slab[32:64, 32:64] = w12
    slab[32:48, 64:128] = BIAS_MASK
    slab[64:65, 32:64] = b12
    return jnp.asarray(slab)


# ---------------- pure-JAX reference (unfused params; validates all folds) ----------------
def reference(embedding, pos_enc, params):
    wqkv, wproj, w1, b1, w2, b2 = params
    x = embedding + pos_enc
    qkv = x @ wqkv
    Q, K, V = qkv[..., :E], qkv[..., E:2 * E], qkv[..., 2 * E:]
    mask = jnp.where(jnp.arange(S)[:, None] >= jnp.arange(S)[None, :], 0.0, -jnp.inf)
    heads = []
    for h in range(H):
        Qh, Kh, Vh = (T[..., h * A:(h + 1) * A] for T in (Q, K, V))
        s = jnp.einsum("bqd,bkd->bqk", Qh, Kh) / sqrt(E) + mask[None]
        p = jax.nn.softmax(s, axis=-1)
        heads.append(jnp.einsum("bqk,bkd->bqd", p, Vh))
    attn = jnp.concatenate(heads, axis=2) @ wproj
    mha = _layernorm(x + attn)
    out = jnp.maximum((mha @ w1 + b1[0]) @ w2 + b2[0], 0.0)
    ff = _layernorm(mha + out)
    enc = _layernorm(mha + ff)
    return enc, K, V


if __name__ == "__main__":
    key = jax.random.PRNGKey(0)
    k_emb, k_pos, k_par = jax.random.split(key, 3)
    embedding = jax.random.normal(k_emb, (B, S, E), jnp.float32)
    pos_enc = jax.random.normal(k_pos, (B, S, E), jnp.float32)
    params = init_params(k_par)
    wslab = pack_weights(params)

    enc, k_all, v_all = transformer_encoder(embedding, pos_enc, wslab)
    enc = jax.block_until_ready(enc)

    # API parity with the PyTorch module: list of (K_h, V_h) per head (outside the kernel path).
    kv_list = [(k_all[:, :, h, :], v_all[:, :, h, :]) for h in range(H)]

    ref_enc, ref_K, ref_V = reference(embedding, pos_enc, params)
    assert enc.shape == (B, S, E)
    assert len(kv_list) == H and kv_list[0][0].shape == (B, S, A)
    assert jnp.allclose(enc, ref_enc, atol=1e-4, rtol=1e-4), "enc mismatch vs reference"
    assert jnp.allclose(k_all.reshape(B, S, E), ref_K, atol=1e-4, rtol=1e-4), "K mismatch"
    assert jnp.allclose(v_all.reshape(B, S, E), ref_V, atol=1e-4, rtol=1e-4), "V mismatch"
    print("KERNEL_OK")
</pallas_src>

<mosaic_0001>
module attributes {stable_mosaic.version = 11 : i64} {
  func.func @encoder_kernel(%arg0: memref<16x64xf32, #tpu.memory_space<vmem>>, %arg1: memref<96x128xf32, #tpu.memory_space<vmem>>, %arg2: memref<16x128xf32, #tpu.memory_space<vmem>>) attributes {dimension_semantics = [], scalar_prefetch = 0 : i64, scratch_operands = 0 : i64, tpu.core_type = #tpu.core_type<tc>} {
    %c0 = arith.constant 0 : index
    %c0_0 = arith.constant 0 : index
    %0 = vector.load %arg0[%c0, %c0_0] : memref<16x64xf32, #tpu.memory_space<vmem>>, vector<16x64xf32>
    %1 = vector.extract_strided_slice %0 {offsets = [0, 0], sizes = [16, 32], strides = [1, 1]} : vector<16x64xf32> to vector<16x32xf32>
    %2 = vector.extract_strided_slice %0 {offsets = [0, 32], sizes = [16, 32], strides = [1, 1]} : vector<16x64xf32> to vector<16x32xf32>
    %3 = arith.addf %1, %2 : vector<16x32xf32>
    %c0_1 = arith.constant 0 : index
    %c0_2 = arith.constant 0 : index
    %4 = vector.load %arg1[%c0_1, %c0_2] : memref<96x128xf32, #tpu.memory_space<vmem>>, vector<32x96xf32>
    %c0_3 = arith.constant 0 : index
    %c96 = arith.constant 96 : index
    %5 = vector.load %arg1[%c0_3, %c96] : memref<96x128xf32, #tpu.memory_space<vmem>>, vector<32x32xf32>
    %c32 = arith.constant 32 : index
    %c0_4 = arith.constant 0 : index
    %6 = vector.load %arg1[%c32, %c0_4] : memref<96x128xf32, #tpu.memory_space<vmem>>, vector<64x32xf32>
    %c32_5 = arith.constant 32 : index
    %c32_6 = arith.constant 32 : index
    %7 = vector.load %arg1[%c32_5, %c32_6] : memref<96x128xf32, #tpu.memory_space<vmem>>, vector<32x32xf32>
    %c32_7 = arith.constant 32 : index
    %c64 = arith.constant 64 : index
    %8 = vector.load %arg1[%c32_7, %c64] : memref<96x128xf32, #tpu.memory_space<vmem>>, vector<16x64xf32>
    %c64_8 = arith.constant 64 : index
    %c32_9 = arith.constant 32 : index
    %9 = vector.load %arg1[%c64_8, %c32_9] : memref<96x128xf32, #tpu.memory_space<vmem>>, vector<1x32xf32>
    %cst = arith.constant dense<0.000000e+00> : vector<16x96xf32>
    %10 = tpu.matmul %3, %4, %cst {dimension_numbers = #tpu.dot_dimension_numbers<[1], [0], [0], [1], [0, 0, 1, 1], [], []>} : vector<16x32xf32>, vector<32x96xf32>, vector<16x96xf32> -> vector<16x96xf32>
    %11 = vector.extract_strided_slice %10 {offsets = [0, 0], sizes = [16, 32], strides = [1, 1]} : vector<16x96xf32> to vector<16x32xf32>
    %12 = vector.extract_strided_slice %10 {offsets = [0, 32], sizes = [16, 32], strides = [1, 1]} : vector<16x96xf32> to vector<16x32xf32>
    %13 = vector.extract_strided_slice %10 {offsets = [0, 64], sizes = [16, 32], strides = [1, 1]} : vector<16x96xf32> to vector<16x32xf32>
    %14 = tpu.concatenate %12, %12, %12, %12 in 0 : vector<16x32xf32>, vector<16x32xf32>, vector<16x32xf32>, vector<16x32xf32> -> vector<64x32xf32>
    %15 = arith.mulf %14, %6 : vector<64x32xf32>
    %16 = tpu.concatenate %13, %13, %13, %13 in 0 : vector<16x32xf32>, vector<16x32xf32>, vector<16x32xf32>, vector<16x32xf32> -> vector<64x32xf32>
    %17 = arith.mulf %16, %6 : vector<64x32xf32>
    %cst_10 = arith.constant dense<0.000000e+00> : vector<16x64xf32>
    %18 = tpu.matmul %11, %15, %cst_10 {dimension_numbers = #tpu.dot_dimension_numbers<[1], [1], [0], [0], [0, 0, 1, 0], [], []>} : vector<16x32xf32>, vector<64x32xf32>, vector<16x64xf32> -> vector<16x64xf32>
    %19 = arith.addf %18, %8 : vector<16x64xf32>
    %cst_11 = arith.constant dense<0xFF800000> : vector<16xf32>
    %20 = vector.multi_reduction <maximumf>, %19, %cst_11 [1] : vector<16x64xf32> to vector<16xf32>
    %21 = vector.shape_cast %20 : vector<16xf32> to vector<16x1xf32>
    %22 = vector.broadcast %21 : vector<16x1xf32> to vector<16x64xf32>
    %23 = arith.subf %19, %22 : vector<16x64xf32>
    %24 = math.exp %23 : vector<16x64xf32>
    %25 = tpu.concatenate %17, %6 in 1 : vector<64x32xf32>, vector<64x32xf32> -> vector<64x64xf32>
    %cst_12 = arith.constant dense<0.000000e+00> : vector<16x64xf32>
    %26 = tpu.matmul %24, %25, %cst_12 {dimension_numbers = #tpu.dot_dimension_numbers<[1], [0], [0], [1], [0, 0, 1, 1], [], []>} : vector<16x64xf32>, vector<64x64xf32>, vector<16x64xf32> -> vector<16x64xf32>
    %27 = vector.extract_strided_slice %26 {offsets = [0, 0], sizes = [16, 32], strides = [1, 1]} : vector<16x64xf32> to vector<16x32xf32>
    %28 = vector.extract_strided_slice %26 {offsets = [0, 32], sizes = [16, 32], strides = [1, 1]} : vector<16x64xf32> to vector<16x32xf32>
    %29 = tpu.reciprocal %28 {approx = true} : vector<16x32xf32> -> vector<16x32xf32>
    %30 = arith.mulf %28, %29 : vector<16x32xf32>
    %cst_13 = arith.constant 2.000000e+00 : f32
    %31 = vector.broadcast %cst_13 : f32 to vector<16x32xf32>
    %32 = arith.subf %31, %30 : vector<16x32xf32>
    %33 = arith.mulf %29, %32 : vector<16x32xf32>
    %34 = arith.mulf %27, %33 : vector<16x32xf32>
    %cst_14 = arith.constant dense<0.000000e+00> : vector<16x32xf32>
    %35 = tpu.matmul %34, %5, %cst_14 {dimension_numbers = #tpu.dot_dimension_numbers<[1], [0], [0], [1], [0, 0, 1, 1], [], []>} : vector<16x32xf32>, vector<32x32xf32>, vector<16x32xf32> -> vector<16x32xf32>
    %36 = arith.addf %3, %35 : vector<16x32xf32>
    %cst_15 = arith.constant dense<0.000000e+00> : vector<16xf32>
    %37 = vector.multi_reduction <add>, %36, %cst_15 [1] : vector<16x32xf32> to vector<16xf32>
    %38 = vector.shape_cast %37 : vector<16xf32> to vector<16x1xf32>
    %cst_16 = arith.constant 3.200000e+01 : f32
    %39 = vector.broadcast %cst_16 : f32 to vector<16x1xf32>
    %40 = arith.divf %38, %39 : vector<16x1xf32>
    %41 = vector.broadcast %40 : vector<16x1xf32> to vector<16x32xf32>
    %42 = arith.subf %36, %41 : vector<16x32xf32>
    %43 = arith.mulf %42, %42 : vector<16x32xf32>
    %cst_17 = arith.constant dense<0.000000e+00> : vector<16xf32>
    %44 = vector.multi_reduction <add>, %43, %cst_17 [1] : vector<16x32xf32> to vector<16xf32>
    %45 = vector.shape_cast %44 : vector<16xf32> to vector<16x1xf32>
    %cst_18 = arith.constant 3.200000e+01 : f32
    %46 = vector.broadcast %cst_18 : f32 to vector<16x1xf32>
    %47 = arith.divf %45, %46 : vector<16x1xf32>
    %cst_19 = arith.constant 9.99999974E-6 : f32
    %48 = vector.broadcast %cst_19 : f32 to vector<16x1xf32>
    %49 = arith.addf %47, %48 : vector<16x1xf32>
    %50 = math.rsqrt %49 : vector<16x1xf32>
    %51 = vector.broadcast %50 : vector<16x1xf32> to vector<16x32xf32>
    %52 = arith.mulf %42, %51 : vector<16x32xf32>
    %cst_20 = arith.constant dense<0.000000e+00> : vector<16x32xf32>
    %53 = tpu.matmul %52, %7, %cst_20 {dimension_numbers = #tpu.dot_dimension_numbers<[1], [0], [0], [1], [0, 0, 1, 1], [], []>} : vector<16x32xf32>, vector<32x32xf32>, vector<16x32xf32> -> vector<16x32xf32>
    %54 = vector.broadcast %9 : vector<1x32xf32> to vector<16x32xf32>
    %55 = arith.addf %53, %54 : vector<16x32xf32>
    %cst_21 = arith.constant 0.000000e+00 : f32
    %56 = vector.broadcast %cst_21 : f32 to vector<16x32xf32>
    %57 = arith.maximumf %55, %56 : vector<16x32xf32>
    %58 = arith.addf %52, %57 : vector<16x32xf32>
    %cst_22 = arith.constant dense<0.000000e+00> : vector<16xf32>
    %59 = vector.multi_reduction <add>, %58, %cst_22 [1] : vector<16x32xf32> to vector<16xf32>
    %60 = vector.shape_cast %59 : vector<16xf32> to vector<16x1xf32>
    %cst_23 = arith.constant 3.200000e+01 : f32
    %61 = vector.broadcast %cst_23 : f32 to vector<16x1xf32>
    %62 = arith.divf %60, %61 : vector<16x1xf32>
    %63 = vector.broadcast %62 : vector<16x1xf32> to vector<16x32xf32>
    %64 = arith.subf %58, %63 : vector<16x32xf32>
    %65 = arith.mulf %64, %64 : vector<16x32xf32>
    %cst_24 = arith.constant dense<0.000000e+00> : vector<16xf32>
    %66 = vector.multi_reduction <add>, %65, %cst_24 [1] : vector<16x32xf32> to vector<16xf32>
    %67 = vector.shape_cast %66 : vector<16xf32> to vector<16x1xf32>
    %cst_25 = arith.constant 3.200000e+01 : f32
    %68 = vector.broadcast %cst_25 : f32 to vector<16x1xf32>
    %69 = arith.divf %67, %68 : vector<16x1xf32>
    %cst_26 = arith.constant 9.99999974E-6 : f32
    %70 = vector.broadcast %cst_26 : f32 to vector<16x1xf32>
    %71 = arith.addf %69, %70 : vector<16x1xf32>
    %72 = math.rsqrt %71 : vector<16x1xf32>
    %73 = vector.broadcast %72 : vector<16x1xf32> to vector<16x32xf32>
    %74 = arith.mulf %64, %73 : vector<16x32xf32>
    %75 = arith.addf %52, %74 : vector<16x32xf32>
    %cst_27 = arith.constant dense<0.000000e+00> : vector<16xf32>
    %76 = vector.multi_reduction <add>, %75, %cst_27 [1] : vector<16x32xf32> to vector<16xf32>
    %77 = vector.shape_cast %76 : vector<16xf32> to vector<16x1xf32>
    %cst_28 = arith.constant 3.200000e+01 : f32
    %78 = vector.broadcast %cst_28 : f32 to vector<16x1xf32>
    %79 = arith.divf %77, %78 : vector<16x1xf32>
    %80 = vector.broadcast %79 : vector<16x1xf32> to vector<16x32xf32>
    %81 = arith.subf %75, %80 : vector<16x32xf32>
    %82 = arith.mulf %81, %81 : vector<16x32xf32>
    %cst_29 = arith.constant dense<0.000000e+00> : vector<16xf32>
    %83 = vector.multi_reduction <add>, %82, %cst_29 [1] : vector<16x32xf32> to vector<16xf32>
    %84 = vector.shape_cast %83 : vector<16xf32> to vector<16x1xf32>
    %cst_30 = arith.constant 3.200000e+01 : f32
    %85 = vector.broadcast %cst_30 : f32 to vector<16x1xf32>
    %86 = arith.divf %84, %85 : vector<16x1xf32>
    %cst_31 = arith.constant 9.99999974E-6 : f32
    %87 = vector.broadcast %cst_31 : f32 to vector<16x1xf32>
    %88 = arith.addf %86, %87 : vector<16x1xf32>
    %89 = math.rsqrt %88 : vector<16x1xf32>
    %90 = vector.broadcast %89 : vector<16x1xf32> to vector<16x32xf32>
    %91 = arith.mulf %81, %90 : vector<16x32xf32>
    %cst_32 = arith.constant 0.000000e+00 : f32
    %92 = vector.broadcast %cst_32 : f32 to vector<16x32xf32>
    %93 = tpu.concatenate %91, %12, %13, %92 in 1 : vector<16x32xf32>, vector<16x32xf32>, vector<16x32xf32>, vector<16x32xf32> -> vector<16x128xf32>
    %c0_33 = arith.constant 0 : index
    %c0_34 = arith.constant 0 : index
    %94 = vector.load %arg2[%c0_33, %c0_34] : memref<16x128xf32, #tpu.memory_space<vmem>>, vector<16x128xf32>
    tpu.vector_store %arg2[%c0_33, %c0_34], %93 {strides = array<i32>} : memref<16x128xf32, #tpu.memory_space<vmem>>, vector<16x128xf32>,
    return
  }
}

</mosaic_0001>

<llo_original>
// kernel: transformer_encoder.1
$region0: #{transformer_encoder.1}
  #allocation0 [shape = 'u32[]', space=smem, size = 0x4, offset = 0x4, fixed_abs, tag = 'smem constant byte address 0x4 - core index']
  #allocation1 [shape = 'u32[144,128]{1,0:T(1,128)}', space=vmem, size = 0x12000, scoped, tag = 'internal scratch']
  %s0 = inlined_call_operand.vmem [shape: f32[16,64], index: 0, kind: input, shape index: {}]
  %s1 = inlined_call_operand.hbm [shape: f32[96,128], index: 1, kind: input, shape index: {}]
  %s2 = inlined_call_operand.vmem [shape: f32[16,128], index: 2, kind: output, shape index: {}]
  %s3 = sld [smem:[#allocation0]]
  $region22: #{transformer_encoder.1} parent=0
    _
  %s5 = ssub.s32 1, %s3
  %s6 = scalar_select 0, %s5, %s3
  $region1: #{transformer_encoder.1} parent=0
    #allocation2 [shape = 'u8[49152]{0}', space=vmem, size = 0xc000, scoped, tag = 'input window, operand 1, single buffered']
    #allocation3 [shape = 's32[1]{0}', space=sflag, size = 0x4, scoped, tag = 'scoped memory for transformer_encoder.1']
    %7 = vsyncpa [#allocation3], 0
    // Predicated region
    $region2: #{transformer_encoder.1} parent=1 // pred_check
      _
    $region3: #{transformer_encoder.1} parent=1 // pred_check_branch
      %9 = sbr.rel (0) target = $region5
    $region4: #{transformer_encoder.1} parent=1 // pred_region
      _
    $region5: #{transformer_encoder.1} parent=1 // pred_fallthru
      _
    // Predicated region
    $region6: #{transformer_encoder.1} parent=1 // pred_check
      _
    $region7: #{transformer_encoder.1} parent=1 // pred_check_branch
      %11 = sbr.rel (0) target = $region9
    $region8: #{transformer_encoder.1} parent=1 // pred_region
      %s13 = ssub.s32 1536, 1536
      %14 = vsyncadd [#allocation3], %s13
      %s15 = sshll.u32 [#allocation2], 4
      %s16 = int_to_ptr.vmem [resolvable:$true] %s15
      %21 = dma.hbm_to_vmem [thread:$0]  %s1, 1536, %s16, [#allocation3], 128, 128, 8
    $region9: #{transformer_encoder.1} parent=1 // pred_fallthru
      _
    // Predicated region
    $region10: #{transformer_encoder.1} parent=1 // pred_check
      _
    $region11: #{transformer_encoder.1} parent=1 // pred_check_branch
      %23 = sbr.rel (0) target = $region13
    $region12: #{transformer_encoder.1} parent=1 // pred_region
      %24 = dma.done [#allocation3], 1536
    $region13: #{transformer_encoder.1} parent=1 // pred_fallthru
      _
    %v25 = vld [vmem:[%s0] sm:$0xff]
    %v26 = vld [vmem:[%s0 + $0x8] sm:$0xff]
    %29 = vrot.lane.b32.xlu0 %v25, 96
    %v30 = vpop.permute.xlu0 %29
    %31 = vrot.lane.b32.xlu0 %v26, 96
    %v32 = vpop.permute.xlu0 %31
    %v35 = vadd.f32 %v25, %v30
    %v36 = vadd.f32 %v26, %v32
    %v37 = vld [vmem:[#allocation2] sm:$0xff]
    %v38 = vld [vmem:[#allocation2 + $0x8] sm:$0xff]
    %v39 = vld [vmem:[#allocation2 + $0x10] sm:$0xff]
    %v40 = vld [vmem:[#allocation2 + $0x18] sm:$0xff]
    %v41 = vld [vmem:[#allocation2 + $0x20] sm:$0xff]
    %v42 = vld [vmem:[#allocation2 + $0x28] sm:$0xff]
    %v43 = vld [vmem:[#allocation2 + $0x30] sm:$0xff]
    %v44 = vld [vmem:[#allocation2 + $0x38] sm:$0xff]
    %v45 = vld [vmem:[#allocation2 + $0x40] sm:$0xff]
    %v46 = vld [vmem:[#allocation2 + $0x48] sm:$0xff]
    %v47 = vld [vmem:[#allocation2 + $0x50] sm:$0xff]
    %v48 = vld [vmem:[#allocation2 + $0x58] sm:$0xff]
    %v49 = vld [vmem:[#allocation2 + $0x20] sm:$0xff]
    %v50 = vld [vmem:[#allocation2 + $0x28] sm:$0xff]
    %v51 = vld [vmem:[#allocation2 + $0x30] sm:$0xff]
    %v52 = vld [vmem:[#allocation2 + $0x38] sm:$0xff]
    %v53 = vld [vmem:[#allocation2 + $0x40] sm:$0x1]
    %vm54 = vcmask 261120
    %v56 = vsel %vm54, %v35, 0
    %v59 = vsel %vm54, %v36, 0
    %61 = vmatprep.subr.mxu0 0.0
    %62 = vmatpush1.msra.mxu0 %v37
    %63 = vmatprep.subr.mxu0 0.0
    %64 = vmatpush1.msra.mxu0 %v38
    %65 = vmatprep.subr.mxu0 0.0
    %66 = vmatpush1.msra.mxu0 %v39
    %67 = vmatprep.subr.mxu0 0.0
    %68 = vmatpush1.msra.mxu0 %v40
    %69 = vmatprep.subr.mxu0 0.0
    %70 = vmatpush1.msra.mxu0 0.0
    %71 = vmatprep.subr.mxu0 0.0
    %72 = vmatpush1.msra.mxu0 0.0
    %73 = vmatprep.subr.mxu0 0.0
    %74 = vmatpush1.msra.mxu0 0.0
    %75 = vmatprep.subr.mxu0 0.0
    %76 = vmatpush1.msra.mxu0 0.0
    %77 = vmatprep.subr.mxu0 0.0
    %78 = vmatpush1.msra.mxu0 0.0
    %79 = vmatprep.subr.mxu0 0.0
    %80 = vmatpush1.msra.mxu0 0.0
    %81 = vmatprep.subr.mxu0 0.0
    %82 = vmatpush1.msra.mxu0 0.0
    %83 = vmatprep.subr.mxu0 0.0
    %84 = vmatpush1.msra.mxu0 0.0
    %85 = vmatprep.subr.mxu0 0.0
    %86 = vmatpush1.msra.mxu0 0.0
    %87 = vmatprep.subr.mxu0 0.0
    %88 = vmatpush1.msra.mxu0 0.0
    %89 = vmatprep.subr.mxu0 0.0
    %90 = vmatpush1.msra.mxu0 0.0
    %91 = vmatprep.subr.mxu0 0.0
    %92 = vmatpush1.msra.mxu0 0.0
    %93 = vmatprep.subr.mxu0 0.0
    %94 = vmatpush1.msra.mxu0 0.0
    %95 = vmatprep.subr.mxu0 0.0
    %96 = vmatpush1.msra.mxu0 0.0
    %97 = vmatprep.subr.mxu0 0.0
    %98 = vmatpush1.msra.mxu0 0.0
    %99 = vmatprep.subr.mxu0 0.0
    %100 = vmatpush1.msra.mxu0 0.0
    %101 = vmatprep.subr.mxu0 0.0
    %102 = vmatpush1.msra.mxu0 0.0
    %103 = vmatprep.subr.mxu0 0.0
    %104 = vmatpush1.msra.mxu0 0.0
    %105 = vmatprep.subr.mxu0 0.0
    %106 = vmatpush1.msra.mxu0 0.0
    %107 = vmatprep.subr.mxu0 0.0
    %108 = vmatpush1.msra.mxu0 0.0
    %109 = vmatprep.subr.mxu0 0.0
    %110 = vmatpush1.msra.mxu0 0.0
    %111 = vmatprep.subr.mxu0 0.0
    %112 = vmatpush1.msra.mxu0 0.0
    %113 = vmatprep.subr.mxu0 0.0
    %114 = vmatpush1.msra.mxu0 0.0
    %115 = vmatprep.subr.mxu0 0.0
    %116 = vmatpush1.msra.mxu0 0.0
    %117 = vmatprep.subr.mxu0 0.0
    %118 = vmatpush1.msra.mxu0 0.0
    %119 = vmatprep.subr.mxu0 0.0
    %120 = vmatpush1.msra.mxu0 0.0
    %121 = vmatprep.subr.mxu0 0.0
    %122 = vmatpush1.msra.mxu0 0.0
    %123 = vmatprep.subr.mxu0 0.0
    %124 = vmatpush1.msra.mxu0 0.0
    %125 = vmatprep.mubr.f32.mxu0 0.0
    %126 = vmatmul.mubr.f32.gmra.mrb[0].mxu0 %v56
    %v127 = vpop.f32.mrb[0].mxu0
    %v128 = vadd.f32 0.0, %v127
    %v129 = vpop.f32.mrb[0].mxu0
    %130 = vmatprep.mubr.f32.mxu0 0.0
    %131 = vmatmul.mubr.f32.gmra.mrb[0].mxu0 %v59
    %v132 = vpop.f32.mrb[0].mxu0
    %v133 = vadd.f32 0.0, %v132
    %v134 = vpop.f32.mrb[0].mxu0
    %135 = vdwg.mxu0
    %144 = vrot.lane.b32.xlu0 %v41, 32
    %v145 = vpop.permute.xlu0 %144
    %146 = vrot.lane.b32.xlu0 %v42, 32
    %v147 = vpop.permute.xlu0 %146
    %148 = vrot.lane.b32.xlu0 %v43, 32
    %v149 = vpop.permute.xlu0 %148
    %150 = vrot.lane.b32.xlu0 %v44, 32
    %v151 = vpop.permute.xlu0 %150
    %152 = vrot.lane.b32.xlu0 %v45, 32
    %v153 = vpop.permute.xlu0 %152
    %154 = vrot.lane.b32.xlu0 %v46, 32
    %v155 = vpop.permute.xlu0 %154
    %156 = vrot.lane.b32.xlu0 %v47, 32
    %v157 = vpop.permute.xlu0 %156
    %158 = vrot.lane.b32.xlu0 %v48, 32
    %v159 = vpop.permute.xlu0 %158
    %v168 = vmul.f32 %v128, %v145
    %v169 = vmul.f32 %v133, %v147
    %v170 = vmul.f32 %v128, %v149
    %v171 = vmul.f32 %v133, %v151
    %v172 = vmul.f32 %v128, %v153
    %v173 = vmul.f32 %v133, %v155
    %v174 = vmul.f32 %v128, %v157
    %v175 = vmul.f32 %v133, %v159
    %176 = vrot.lane.b32.xlu0 %v41, 64
    %v177 = vpop.permute.xlu0 %176
    %178 = vrot.lane.b32.xlu0 %v42, 64
    %v179 = vpop.permute.xlu0 %178
    %180 = vrot.lane.b32.xlu0 %v43, 64
    %v181 = vpop.permute.xlu0 %180
    %182 = vrot.lane.b32.xlu0 %v44, 64
    %v183 = vpop.permute.xlu0 %182
    %184 = vrot.lane.b32.xlu0 %v45, 64
    %v185 = vpop.permute.xlu0 %184
    %186 = vrot.lane.b32.xlu0 %v46, 64
    %v187 = vpop.permute.xlu0 %186
    %188 = vrot.lane.b32.xlu0 %v47, 64
    %v189 = vpop.permute.xlu0 %188
    %190 = vrot.lane.b32.xlu0 %v48, 64
    %v191 = vpop.permute.xlu0 %190
    %v200 = vmul.f32 %v128, %v177
    %v201 = vmul.f32 %v133, %v179
    %v202 = vmul.f32 %v128, %v181
    %v203 = vmul.f32 %v133, %v183
    %v204 = vmul.f32 %v128, %v185
    %v205 = vmul.f32 %v133, %v187
    %v206 = vmul.f32 %v128, %v189
    %v207 = vmul.f32 %v133, %v191
    %216 = vrot.lane.b32.xlu0 %v168, 96
    %v217 = vpop.permute.xlu0 %216
    %218 = vrot.lane.b32.xlu0 %v169, 96
    %v219 = vpop.permute.xlu0 %218
    %220 = vrot.lane.b32.xlu0 %v170, 96
    %v221 = vpop.permute.xlu0 %220
    %222 = vrot.lane.b32.xlu0 %v171, 96
    %v223 = vpop.permute.xlu0 %222
    %224 = vrot.lane.b32.xlu0 %v172, 96
    %v225 = vpop.permute.xlu0 %224
    %226 = vrot.lane.b32.xlu0 %v173, 96
    %v227 = vpop.permute.xlu0 %226
    %228 = vrot.lane.b32.xlu0 %v174, 96
    %v229 = vpop.permute.xlu0 %228
    %230 = vrot.lane.b32.xlu0 %v175, 96
    %v231 = vpop.permute.xlu0 %230
    %234 = vrot.lane.b32.xlu0 %v49, 64
    %v235 = vpop.permute.xlu0 %234
    %236 = vrot.lane.b32.xlu0 %v50, 64
    %v237 = vpop.permute.xlu0 %236
    %v241 = vsel %vm54, %v128, 0
    %v244 = vsel %vm54, %v133, 0
    %v246 = vsel %vm54, %v217, 0
    %v248 = vsel %vm54, %v219, 0
    %v250 = vsel %vm54, %v221, 0
    %v252 = vsel %vm54, %v223, 0
    %v254 = vsel %vm54, %v225, 0
    %v256 = vsel %vm54, %v227, 0
    %v258 = vsel %vm54, %v229, 0
    %v260 = vsel %vm54, %v231, 0
    %262 = vmatprep.subr.mxu0 0.0
    %263 = vmatpush1.xpose.msra.mxu0 %v246
    %264 = vmatprep.subr.mxu0 0.0
    %265 = vmatpush1.xpose.msra.mxu0 %v248
    %266 = vmatprep.subr.mxu0 0.0
    %267 = vmatpush1.xpose.msra.mxu0 %v250
    %268 = vmatprep.subr.mxu0 0.0
    %269 = vmatpush1.xpose.msra.mxu0 %v252
    %270 = vmatprep.subr.mxu0 0.0
    %271 = vmatpush1.xpose.msra.mxu0 %v254
    %272 = vmatprep.subr.mxu0 0.0
    %273 = vmatpush1.xpose.msra.mxu0 %v256
    %274 = vmatprep.subr.mxu0 0.0
    %275 = vmatpush1.xpose.msra.mxu0 %v258
    %276 = vmatprep.subr.mxu0 0.0
    %277 = vmatpush1.xpose.msra.mxu0 %v260
    %278 = vmatprep.subr.mxu0 0.0
    %279 = vmatpush1.xpose.msra.mxu0 0.0
    %280 = vmatprep.subr.mxu0 0.0
    %281 = vmatpush1.xpose.msra.mxu0 0.0
    %282 = vmatprep.subr.mxu0 0.0
    %283 = vmatpush1.xpose.msra.mxu0 0.0
    %284 = vmatprep.subr.mxu0 0.0
    %285 = vmatpush1.xpose.msra.mxu0 0.0
    %286 = vmatprep.subr.mxu0 0.0
    %287 = vmatpush1.xpose.msra.mxu0 0.0
    %288 = vmatprep.subr.mxu0 0.0
    %289 = vmatpush1.xpose.msra.mxu0 0.0
    %290 = vmatprep.subr.mxu0 0.0
    %291 = vmatpush1.xpose.msra.mxu0 0.0
    %292 = vmatprep.subr.mxu0 0.0
    %293 = vmatpush1.xpose.msra.mxu0 0.0
    %294 = vmatprep.subr.mxu0 0.0
    %295 = vmatpush1.xpose.msra.mxu0 0.0
    %296 = vmatprep.subr.mxu0 0.0
    %297 = vmatpush1.xpose.msra.mxu0 0.0
    %298 = vmatprep.subr.mxu0 0.0
    %299 = vmatpush1.xpose.msra.mxu0 0.0
    %300 = vmatprep.subr.mxu0 0.0
    %301 = vmatpush1.xpose.msra.mxu0 0.0
    %302 = vmatprep.subr.mxu0 0.0
    %303 = vmatpush1.xpose.msra.mxu0 0.0
    %304 = vmatprep.subr.mxu0 0.0
    %305 = vmatpush1.xpose.msra.mxu0 0.0
    %306 = vmatprep.subr.mxu0 0.0
    %307 = vmatpush1.xpose.msra.mxu0 0.0
    %308 = vmatprep.subr.mxu0 0.0
    %309 = vmatpush1.xpose.msra.mxu0 0.0
    %310 = vmatprep.subr.mxu0 0.0
    %311 = vmatpush1.xpose.msra.mxu0 0.0
    %312 = vmatprep.subr.mxu0 0.0
    %313 = vmatpush1.xpose.msra.mxu0 0.0
    %314 = vmatprep.subr.mxu0 0.0
    %315 = vmatpush1.xpose.msra.mxu0 0.0
    %316 = vmatprep.subr.mxu0 0.0
    %317 = vmatpush1.xpose.msra.mxu0 0.0
    %318 = vmatprep.subr.mxu0 0.0
    %319 = vmatpush1.xpose.msra.mxu0 0.0
    %320 = vmatprep.subr.mxu0 0.0
    %321 = vmatpush1.xpose.msra.mxu0 0.0
    %322 = vmatprep.subr.mxu0 0.0
    %323 = vmatpush1.xpose.msra.mxu0 0.0
    %324 = vmatprep.subr.mxu0 0.0
    %325 = vmatpush1.xpose.msra.mxu0 0.0
    %326 = vmatprep.mubr.f32.mxu0 0.0
    %327 = vmatmul.mubr.f32.gmra.mrb[0].mxu0 %v241
    %v328 = vpop.f32.mrb[0].mxu0
    %v329 = vadd.f32 %v235, %v328
    %v330 = vpop.f32.mrb[0].mxu0
    %331 = vmatprep.mubr.f32.mxu0 0.0
    %332 = vmatmul.mubr.f32.gmra.mrb[0].mxu0 %v244
    %v333 = vpop.f32.mrb[0].mxu0
    %v334 = vadd.f32 %v237, %v333
    %v335 = vpop.f32.mrb[0].mxu0
    %336 = vdwg.mxu0
    %vm337 = vcmask 523264
    %v338 = vsel %vm337, %v329, -inf
    %339 = vmax.xlane.f32.xlu0 %v338
    %v340 = vpop.xlane.xlu0 %339
    %v341 = vsel %vm337, %v334, -inf
    %342 = vmax.xlane.f32.xlu0 %v341
    %v343 = vpop.xlane.xlu0 %342
    %v344 = vsub.f32 %v329, %v340
    %v345 = vsub.f32 %v334, %v343
    %v346 = vmul.f32 %v344, 1.442695
    %v347 = vpow.pop %v346
    %v348 = vmul.f32 %v345, 1.442695
    %v349 = vpow.pop %v348
    %358 = vrot.lane.b32.xlu0 %v200, 64
    %v359 = vpop.permute.xlu0 %358
    %360 = vrot.lane.b32.xlu0 %v201, 64
    %v361 = vpop.permute.xlu0 %360
    %362 = vrot.lane.b32.xlu0 %v202, 64
    %v363 = vpop.permute.xlu0 %362
    %364 = vrot.lane.b32.xlu0 %v203, 64
    %v365 = vpop.permute.xlu0 %364
    %366 = vrot.lane.b32.xlu0 %v204, 64
    %v367 = vpop.permute.xlu0 %366
    %368 = vrot.lane.b32.xlu0 %v205, 64
    %v369 = vpop.permute.xlu0 %368
    %370 = vrot.lane.b32.xlu0 %v206, 64
    %v371 = vpop.permute.xlu0 %370
    %372 = vrot.lane.b32.xlu0 %v207, 64
    %v373 = vpop.permute.xlu0 %372
    %v382 = vsel %vm54, %v359, %v145
    %v383 = vsel %vm54, %v361, %v147
    %v384 = vsel %vm54, %v363, %v149
    %v385 = vsel %vm54, %v365, %v151
    %v386 = vsel %vm54, %v367, %v153
    %v387 = vsel %vm54, %v369, %v155
    %v388 = vsel %vm54, %v371, %v157
    %v389 = vsel %vm54, %v373, %v159
    %v391 = vsel %vm337, %v347, 0
    %v394 = vsel %vm337, %v349, 0
    %396 = vmatprep.subr.mxu0 0.0
    %397 = vmatpush1.msra.mxu0 %v382
    %398 = vmatprep.subr.mxu0 0.0
    %399 = vmatpush1.msra.mxu0 %v383
    %400 = vmatprep.subr.mxu0 0.0
    %401 = vmatpush1.msra.mxu0 %v384
    %402 = vmatprep.subr.mxu0 0.0
    %403 = vmatpush1.msra.mxu0 %v385
    %404 = vmatprep.subr.mxu0 0.0
    %405 = vmatpush1.msra.mxu0 %v386
    %406 = vmatprep.subr.mxu0 0.0
    %407 = vmatpush1.msra.mxu0 %v387
    %408 = vmatprep.subr.mxu0 0.0
    %409 = vmatpush1.msra.mxu0 %v388
    %410 = vmatprep.subr.mxu0 0.0
    %411 = vmatpush1.msra.mxu0 %v389
    %412 = vmatprep.subr.mxu0 0.0
    %413 = vmatpush1.msra.mxu0 0.0
    %414 = vmatprep.subr.mxu0 0.0
    %415 = vmatpush1.msra.mxu0 0.0
    %416 = vmatprep.subr.mxu0 0.0
    %417 = vmatpush1.msra.mxu0 0.0
    %418 = vmatprep.subr.mxu0 0.0
    %419 = vmatpush1.msra.mxu0 0.0
    %420 = vmatprep.subr.mxu0 0.0
    %421 = vmatpush1.msra.mxu0 0.0
    %422 = vmatprep.subr.mxu0 0.0
    %423 = vmatpush1.msra.mxu0 0.0
    %424 = vmatprep.subr.mxu0 0.0
    %425 = vmatpush1.msra.mxu0 0.0
    %426 = vmatprep.subr.mxu0 0.0
    %427 = vmatpush1.msra.mxu0 0.0
    %428 = vmatprep.subr.mxu0 0.0
    %429 = vmatpush1.msra.mxu0 0.0
    %430 = vmatprep.subr.mxu0 0.0
    %431 = vmatpush1.msra.mxu0 0.0
    %432 = vmatprep.subr.mxu0 0.0
    %433 = vmatpush1.msra.mxu0 0.0
    %434 = vmatprep.subr.mxu0 0.0
    %435 = vmatpush1.msra.mxu0 0.0
    %436 = vmatprep.subr.mxu0 0.0
    %437 = vmatpush1.msra.mxu0 0.0
    %438 = vmatprep.subr.mxu0 0.0
    %439 = vmatpush1.msra.mxu0 0.0
    %440 = vmatprep.subr.mxu0 0.0
    %441 = vmatpush1.msra.mxu0 0.0
    %442 = vmatprep.subr.mxu0 0.0
    %443 = vmatpush1.msra.mxu0 0.0
    %444 = vmatprep.subr.mxu0 0.0
    %445 = vmatpush1.msra.mxu0 0.0
    %446 = vmatprep.subr.mxu0 0.0
    %447 = vmatpush1.msra.mxu0 0.0
    %448 = vmatprep.subr.mxu0 0.0
    %449 = vmatpush1.msra.mxu0 0.0
    %450 = vmatprep.subr.mxu0 0.0
    %451 = vmatpush1.msra.mxu0 0.0
    %452 = vmatprep.subr.mxu0 0.0
    %453 = vmatpush1.msra.mxu0 0.0
    %454 = vmatprep.subr.mxu0 0.0
    %455 = vmatpush1.msra.mxu0 0.0
    %456 = vmatprep.subr.mxu0 0.0
    %457 = vmatpush1.msra.mxu0 0.0
    %458 = vmatprep.subr.mxu0 0.0
    %459 = vmatpush1.msra.mxu0 0.0
    %460 = vmatprep.mubr.f32.mxu0 0.0
    %461 = vmatmul.mubr.f32.gmra.mrb[0].mxu0 %v391
    %v462 = vpop.f32.mrb[0].mxu0
    %v463 = vadd.f32 0.0, %v462
    %v464 = vpop.f32.mrb[0].mxu0
    %465 = vmatprep.mubr.f32.mxu0 0.0
    %466 = vmatmul.mubr.f32.gmra.mrb[0].mxu0 %v394
    %v467 = vpop.f32.mrb[0].mxu0
    %v468 = vadd.f32 0.0, %v467
    %v469 = vpop.f32.mrb[0].mxu0
    %470 = vdwg.mxu0
    %v471 = vrcp.pop %v463
    %v472 = vrcp.pop %v468
    %v473 = vmul.f32 %v463, %v471
    %v474 = vmul.f32 %v468, %v472
    %v475 = vsub.f32 2.0, %v473
    %v476 = vsub.f32 2.0, %v474
    %v477 = vmul.f32 %v471, %v475
    %v478 = vmul.f32 %v472, %v476
    %481 = vrot.lane.b32.xlu0 %v477, 96
    %v482 = vpop.permute.xlu0 %481
    %483 = vrot.lane.b32.xlu0 %v478, 96
    %v484 = vpop.permute.xlu0 %483
    %v487 = vmul.f32 %v463, %v482
    %v488 = vmul.f32 %v468, %v484
    %493 = vrot.lane.b32.xlu0 %v37, 32
    %v494 = vpop.permute.xlu0 %493
    %495 = vrot.lane.b32.xlu0 %v38, 32
    %v496 = vpop.permute.xlu0 %495
    %497 = vrot.lane.b32.xlu0 %v39, 32
    %v498 = vpop.permute.xlu0 %497
    %499 = vrot.lane.b32.xlu0 %v40, 32
    %v500 = vpop.permute.xlu0 %499
    %v506 = vsel %vm54, %v487, 0
    %v509 = vsel %vm54, %v488, 0
    %511 = vmatprep.subr.mxu0 0.0
    %512 = vmatpush1.msra.mxu0 %v494
    %513 = vmatprep.subr.mxu0 0.0
    %514 = vmatpush1.msra.mxu0 %v496
    %515 = vmatprep.subr.mxu0 0.0
    %516 = vmatpush1.msra.mxu0 %v498
    %517 = vmatprep.subr.mxu0 0.0
    %518 = vmatpush1.msra.mxu0 %v500
    %519 = vmatprep.subr.mxu0 0.0
    %520 = vmatpush1.msra.mxu0 0.0
    %521 = vmatprep.subr.mxu0 0.0
    %522 = vmatpush1.msra.mxu0 0.0
    %523 = vmatprep.subr.mxu0 0.0
    %524 = vmatpush1.msra.mxu0 0.0
    %525 = vmatprep.subr.mxu0 0.0
    %526 = vmatpush1.msra.mxu0 0.0
    %527 = vmatprep.subr.mxu0 0.0
    %528 = vmatpush1.msra.mxu0 0.0
    %529 = vmatprep.subr.mxu0 0.0
    %530 = vmatpush1.msra.mxu0 0.0
    %531 = vmatprep.subr.mxu0 0.0
    %532 = vmatpush1.msra.mxu0 0.0
    %533 = vmatprep.subr.mxu0 0.0
    %534 = vmatpush1.msra.mxu0 0.0
    %535 = vmatprep.subr.mxu0 0.0
    %536 = vmatpush1.msra.mxu0 0.0
    %537 = vmatprep.subr.mxu0 0.0
    %538 = vmatpush1.msra.mxu0 0.0
    %539 = vmatprep.subr.mxu0 0.0
    %540 = vmatpush1.msra.mxu0 0.0
    %541 = vmatprep.subr.mxu0 0.0
    %542 = vmatpush1.msra.mxu0 0.0
    %543 = vmatprep.subr.mxu0 0.0
    %544 = vmatpush1.msra.mxu0 0.0
    %545 = vmatprep.subr.mxu0 0.0
    %546 = vmatpush1.msra.mxu0 0.0
    %547 = vmatprep.subr.mxu0 0.0
    %548 = vmatpush1.msra.mxu0 0.0
    %549 = vmatprep.subr.mxu0 0.0
    %550 = vmatpush1.msra.mxu0 0.0
    %551 = vmatprep.subr.mxu0 0.0
    %552 = vmatpush1.msra.mxu0 0.0
    %553 = vmatprep.subr.mxu0 0.0
    %554 = vmatpush1.msra.mxu0 0.0
    %555 = vmatprep.subr.mxu0 0.0
    %556 = vmatpush1.msra.mxu0 0.0
    %557 = vmatprep.subr.mxu0 0.0
    %558 = vmatpush1.msra.mxu0 0.0
    %559 = vmatprep.subr.mxu0 0.0
    %560 = vmatpush1.msra.mxu0 0.0
    %561 = vmatprep.subr.mxu0 0.0
    %562 = vmatpush1.msra.mxu0 0.0
    %563 = vmatprep.subr.mxu0 0.0
    %564 = vmatpush1.msra.mxu0 0.0
    %565 = vmatprep.subr.mxu0 0.0
    %566 = vmatpush1.msra.mxu0 0.0
    %567 = vmatprep.subr.mxu0 0.0
    %568 = vmatpush1.msra.mxu0 0.0
    %569 = vmatprep.subr.mxu0 0.0
    %570 = vmatpush1.msra.mxu0 0.0
    %571 = vmatprep.subr.mxu0 0.0
    %572 = vmatpush1.msra.mxu0 0.0
    %573 = vmatprep.subr.mxu0 0.0
    %574 = vmatpush1.msra.mxu0 0.0
    %575 = vmatprep.mubr.f32.mxu0 0.0
    %576 = vmatmul.mubr.f32.gmra.mrb[0].mxu0 %v506
    %v577 = vpop.f32.mrb[0].mxu0
    %v578 = vadd.f32 0.0, %v577
    %v579 = vpop.f32.mrb[0].mxu0
    %580 = vmatprep.mubr.f32.mxu0 0.0
    %581 = vmatmul.mubr.f32.gmra.mrb[0].mxu0 %v509
    %v582 = vpop.f32.mrb[0].mxu0
    %v583 = vadd.f32 0.0, %v582
    %v584 = vpop.f32.mrb[0].mxu0
    %585 = vdwg.mxu0
    %v586 = vadd.f32 %v35, %v578
    %v587 = vadd.f32 %v36, %v583
    %v588 = vsel %vm54, %v586, 0.0
    %589 = vadd.xlane.f32.xlu0 %v588
    %v590 = vpop.xlane.xlu0 %589
    %v591 = vsel %vm54, %v587, 0.0
    %592 = vadd.xlane.f32.xlu0 %v591
    %v593 = vpop.xlane.xlu0 %592
    %v594 = vrcp.pop 32.0
    %v595 = vmul.f32 %v590, %v594
    %v596 = vmul.f32 %v593, %v594
    %v597 = vsub.f32 %v586, %v595
    %v598 = vsub.f32 %v587, %v596
    %v599 = vmul.f32 %v597, %v597
    %v600 = vmul.f32 %v598, %v598
    %v601 = vsel %vm54, %v599, 0.0
    %602 = vadd.xlane.f32.xlu0 %v601
    %v603 = vpop.xlane.xlu0 %602
    %v604 = vsel %vm54, %v600, 0.0
    %605 = vadd.xlane.f32.xlu0 %v604
    %v606 = vpop.xlane.xlu0 %605
    %v607 = vmul.f32 %v603, %v594
    %v608 = vmul.f32 %v606, %v594
    %v609 = vadd.f32 %v607, 1e-05
    %v610 = vadd.f32 %v608, 1e-05
    %v611 = vrsqrt.pop %v609
    %v612 = vrsqrt.pop %v610
    %v613 = vmul.f32 %v597, %v611
    %v614 = vmul.f32 %v598, %v612
    %v615 = vlaneseq
    %v616 = vshrl.u32 %v615, 7
    %v617 = vsub.s32 0, %v616
    %v618 = vrot.slane %v53, %v617
    %621 = vrot.lane.b32.xlu0 %v49, 96
    %v622 = vpop.permute.xlu0 %621
    %623 = vrot.lane.b32.xlu0 %v50, 96
    %v624 = vpop.permute.xlu0 %623
    %625 = vrot.lane.b32.xlu0 %v51, 96
    %v626 = vpop.permute.xlu0 %625
    %627 = vrot.lane.b32.xlu0 %v52, 96
    %v628 = vpop.permute.xlu0 %627
    %634 = vrot.lane.b32.xlu0 %v618, 96
    %v635 = vpop.permute.xlu0 %634
    %v638 = vsel %vm54, %v613, 0
    %v641 = vsel %vm54, %v614, 0
    %643 = vmatprep.subr.mxu0 0.0
    %644 = vmatpush1.msra.mxu0 %v622
    %645 = vmatprep.subr.mxu0 0.0
    %646 = vmatpush1.msra.mxu0 %v624
    %647 = vmatprep.subr.mxu0 0.0
    %648 = vmatpush1.msra.mxu0 %v626
    %649 = vmatprep.subr.mxu0 0.0
    %650 = vmatpush1.msra.mxu0 %v628
    %651 = vmatprep.subr.mxu0 0.0
    %652 = vmatpush1.msra.mxu0 0.0
    %653 = vmatprep.subr.mxu0 0.0
    %654 = vmatpush1.msra.mxu0 0.0
    %655 = vmatprep.subr.mxu0 0.0
    %656 = vmatpush1.msra.mxu0 0.0
    %657 = vmatprep.subr.mxu0 0.0
    %658 = vmatpush1.msra.mxu0 0.0
    %659 = vmatprep.subr.mxu0 0.0
    %660 = vmatpush1.msra.mxu0 0.0
    %661 = vmatprep.subr.mxu0 0.0
    %662 = vmatpush1.msra.mxu0 0.0
    %663 = vmatprep.subr.mxu0 0.0
    %664 = vmatpush1.msra.mxu0 0.0
    %665 = vmatprep.subr.mxu0 0.0
    %666 = vmatpush1.msra.mxu0 0.0
    %667 = vmatprep.subr.mxu0 0.0
    %668 = vmatpush1.msra.mxu0 0.0
    %669 = vmatprep.subr.mxu0 0.0
    %670 = vmatpush1.msra.mxu0 0.0
    %671 = vmatprep.subr.mxu0 0.0
    %672 = vmatpush1.msra.mxu0 0.0
    %673 = vmatprep.subr.mxu0 0.0
    %674 = vmatpush1.msra.mxu0 0.0
    %675 = vmatprep.subr.mxu0 0.0
    %676 = vmatpush1.msra.mxu0 0.0
    %677 = vmatprep.subr.mxu0 0.0
    %678 = vmatpush1.msra.mxu0 0.0
    %679 = vmatprep.subr.mxu0 0.0
    %680 = vmatpush1.msra.mxu0 0.0
    %681 = vmatprep.subr.mxu0 0.0
    %682 = vmatpush1.msra.mxu0 0.0
    %683 = vmatprep.subr.mxu0 0.0
    %684 = vmatpush1.msra.mxu0 0.0
    %685 = vmatprep.subr.mxu0 0.0
    %686 = vmatpush1.msra.mxu0 0.0
    %687 = vmatprep.subr.mxu0 0.0
    %688 = vmatpush1.msra.mxu0 0.0
    %689 = vmatprep.subr.mxu0 0.0
    %690 = vmatpush1.msra.mxu0 0.0
    %691 = vmatprep.subr.mxu0 0.0
    %692 = vmatpush1.msra.mxu0 0.0
    %693 = vmatprep.subr.mxu0 0.0
    %694 = vmatpush1.msra.mxu0 0.0
    %695 = vmatprep.subr.mxu0 0.0
    %696 = vmatpush1.msra.mxu0 0.0
    %697 = vmatprep.subr.mxu0 0.0
    %698 = vmatpush1.msra.mxu0 0.0
    %699 = vmatprep.subr.mxu0 0.0
    %700 = vmatpush1.msra.mxu0 0.0
    %701 = vmatprep.subr.mxu0 0.0
    %702 = vmatpush1.msra.mxu0 0.0
    %703 = vmatprep.subr.mxu0 0.0
    %704 = vmatpush1.msra.mxu0 0.0
    %705 = vmatprep.subr.mxu0 0.0
    %706 = vmatpush1.msra.mxu0 0.0
    %707 = vmatprep.mubr.f32.mxu0 0.0
    %708 = vmatmul.mubr.f32.gmra.mrb[0].mxu0 %v638
    %v709 = vpop.f32.mrb[0].mxu0
    %v710 = vadd.f32 %v635, %v709
    %v711 = vpop.f32.mrb[0].mxu0
    %712 = vmatprep.mubr.f32.mxu0 0.0
    %713 = vmatmul.mubr.f32.gmra.mrb[0].mxu0 %v641
    %v714 = vpop.f32.mrb[0].mxu0
    %v715 = vadd.f32 %v635, %v714
    %v716 = vpop.f32.mrb[0].mxu0
    %717 = vdwg.mxu0
    %v718 = vmax.f32 %v710, 0.0
    %v719 = vmax.f32 %v715, 0.0
    %v720 = vadd.f32 %v613, %v718
    %v721 = vadd.f32 %v614, %v719
    %v722 = vsel %vm54, %v720, 0.0
    %723 = vadd.xlane.f32.xlu0 %v722
    %v724 = vpop.xlane.xlu0 %723
    %v725 = vsel %vm54, %v721, 0.0
    %726 = vadd.xlane.f32.xlu0 %v725
    %v727 = vpop.xlane.xlu0 %726
    %v728 = vmul.f32 %v724, %v594
    %v729 = vmul.f32 %v727, %v594
    %v730 = vsub.f32 %v720, %v728
    %v731 = vsub.f32 %v721, %v729
    %v732 = vmul.f32 %v730, %v730
    %v733 = vmul.f32 %v731, %v731
    %v734 = vsel %vm54, %v732, 0.0
    %735 = vadd.xlane.f32.xlu0 %v734
    %v736 = vpop.xlane.xlu0 %735
    %v737 = vsel %vm54, %v733, 0.0
    %738 = vadd.xlane.f32.xlu0 %v737
    %v739 = vpop.xlane.xlu0 %738
    %v740 = vmul.f32 %v736, %v594
    %v741 = vmul.f32 %v739, %v594
    %v742 = vadd.f32 %v740, 1e-05
    %v743 = vadd.f32 %v741, 1e-05
    %v744 = vrsqrt.pop %v742
    %v745 = vrsqrt.pop %v743
    %v746 = vmul.f32 %v730, %v744
    %v747 = vmul.f32 %v731, %v745
    %v748 = vadd.f32 %v613, %v746
    %v749 = vadd.f32 %v614, %v747
    %v750 = vsel %vm54, %v748, 0.0
    %751 = vadd.xlane.f32.xlu0 %v750
    %v752 = vpop.xlane.xlu0 %751
    %v753 = vsel %vm54, %v749, 0.0
    %754 = vadd.xlane.f32.xlu0 %v753
    %v755 = vpop.xlane.xlu0 %754
    %v756 = vmul.f32 %v752, %v594
    %v757 = vmul.f32 %v755, %v594
    %v758 = vsub.f32 %v748, %v756
    %v759 = vsub.f32 %v749, %v757
    %v760 = vmul.f32 %v758, %v758
    %v761 = vmul.f32 %v759, %v759
    %v762 = vsel %vm54, %v760, 0.0
    %763 = vadd.xlane.f32.xlu0 %v762
    %v764 = vpop.xlane.xlu0 %763
    %v765 = vsel %vm54, %v761, 0.0
    %766 = vadd.xlane.f32.xlu0 %v765
    %v767 = vpop.xlane.xlu0 %766
    %v768 = vmul.f32 %v764, %v594
    %v769 = vmul.f32 %v767, %v594
    %v770 = vadd.f32 %v768, 1e-05
    %v771 = vadd.f32 %v769, 1e-05
    %v772 = vrsqrt.pop %v770
    %v773 = vrsqrt.pop %v771
    %v774 = vmul.f32 %v758, %v772
    %v775 = vmul.f32 %v759, %v773
    %v776 = vsel %vm54, %v774, %v128
    %v777 = vsel %vm54, %v775, %v133
    %v778 = vsel %vm337, %v776, %v128
    %v779 = vsel %vm337, %v777, %v133
    %vm780 = vcmask 785408
    %v781 = vsel %vm780, %v778, 0.0
    %v782 = vsel %vm780, %v779, 0.0
    %783 = vst [vmem:[%s2] sm:$0xff] %v781
    %784 = vst [vmem:[%s2 + $0x8] sm:$0xff] %v782
    // Predicated region
    $region14: #{transformer_encoder.1} parent=1 // pred_check
      _
    $region15: #{transformer_encoder.1} parent=1 // pred_check_branch
      %786 = sbr.rel (0) target = $region17
    $region16: #{transformer_encoder.1} parent=1 // pred_region
      _
    $region17: #{transformer_encoder.1} parent=1 // pred_fallthru
      _
    // Predicated region
    $region18: #{transformer_encoder.1} parent=1 // pred_check
      _
    $region19: #{transformer_encoder.1} parent=1 // pred_check_branch
      %788 = sbr.rel (0) target = $region21
    $region20: #{transformer_encoder.1} parent=1 // pred_region
      _
    $region21: #{transformer_encoder.1} parent=1 // pred_fallthru
      _
    %789 = vsyncpa [#allocation3], 1

</llo_original>
